<compile_context>
chip_gen: v7x
topology: tpu7x:2x2x1
jax: 0.10.0
libtpu: 0.0.40
codegen_flags: <defaults>
</compile_context>

<pallas_src>
import jax
import jax.numpy as jnp
from jax.experimental import pallas as pl
from jax.experimental.pallas import tpu as pltpu

# --- model hyper-parameters (small, consistent with the module) ---
OBS_DIM = 16
HIDDEN_SIZES = (128, 64, 64, 32)
ACT_DIM = 3                      # "box" action space with 3 branches
SUB_ACT_DIM = 8                  # each branch has 8 sub-actions (uniform)
NUM_Q = ACT_DIM * SUB_ACT_DIM    # 24
HEAD_WIDTH = 2 * NUM_Q           # [adv+value (24) | branch group-sums (24)] = 48
BATCH = 2
LANES = 128

# --- packed-slab row layout (all offsets multiples of 8) ---
R_W0 = 0      # (16, 128)   obs_dim -> 128
R_W1 = 16     # (128, 128)  128 -> 64 (cols 64:128 zero)
R_W2 = 144    # (128, 128)  64 -> 64  (rows/cols 64:128 zero)
R_W3 = 272    # (128, 128)  64 -> 32  (rows 64:, cols 32: zero)
R_WH = 400    # (128, 128)  32 -> 48  (rows 32:, cols 48: zero)
R_B = 528     # (8, 128)    bias rows 0..4 = b0, b1, b2, b3, bhead
SLAB_ROWS = 536


def _branch_dqn_kernel(scale_ref, x_ref, slab_ref, out_ref):
    """Whole forward in one kernel invocation (everything resident in VMEM)."""
    h = x_ref[...]                                                     # (B, obs_dim)

    # feature MLP: Linear + ReLU x4.  All RHS / bias rows are full 128-lane
    # vregs; zero-padded lanes stay exactly zero through the ReLUs.
    h = jnp.maximum(
        jnp.dot(h, slab_ref[R_W0:R_W1, :], preferred_element_type=jnp.float32)
        + slab_ref[R_B + 0:R_B + 1, :], 0.0)                           # (B, 128)
    h = jnp.maximum(
        jnp.dot(h, slab_ref[R_W1:R_W2, :], preferred_element_type=jnp.float32)
        + slab_ref[R_B + 1:R_B + 2, :], 0.0)                           # (B, 128)
    h = jnp.maximum(
        jnp.dot(h, slab_ref[R_W2:R_W3, :], preferred_element_type=jnp.float32)
        + slab_ref[R_B + 2:R_B + 3, :], 0.0)                           # (B, 128)
    h = jnp.maximum(
        jnp.dot(h, slab_ref[R_W3:R_WH, :], preferred_element_type=jnp.float32)
        + slab_ref[R_B + 3:R_B + 4, :], 0.0)                           # (B, 128)

    # Fused head: one MXU pass produces
    #   cols [0:24)  -> adv_i + value for all branches (branch-major, 8 lanes each)
    #   cols [24:48) -> per-row branch group-sums of adv (wa @ G folded in)
    hz = (jnp.dot(h, slab_ref[R_WH:R_B, :], preferred_element_type=jnp.float32)
          + slab_ref[R_B + 4:R_B + 5, :])                              # (B, 128)

    qv = hz[:, 0:NUM_Q]                       # (B, 24): value + adv
    gsum = hz[:, NUM_Q:HEAD_WIDTH]            # (B, 24): per-row branch sums of adv

    # Batch-wide per-branch mean of adv, already broadcast across each
    # branch's 8 lanes.  scale = 1 / (batch * sub_act_dim), read from SMEM.
    mean_b = jnp.sum(gsum, axis=0, keepdims=True) * scale_ref[0, 0]    # (1, 24)

    # Single lane-contiguous store of all branches.
    out_ref[...] = (qv - mean_b).astype(out_ref.dtype)                 # (B, 24)


def _pad_to(a, rows, cols=LANES):
    out = jnp.zeros((rows, cols), jnp.float32)
    return out.at[: a.shape[0], : a.shape[1]].set(a.astype(jnp.float32))


def _pack_params(params):
    """Pack PyTorch-style per-layer params into one (536, 128) f32 slab."""
    wa_flat = jnp.concatenate([params["wa"][i] for i in range(ACT_DIM)], axis=1)  # (32, 24)
    ba_flat = jnp.concatenate([params["ba"][i] for i in range(ACT_DIM)], axis=1)  # (1, 24)

    # Block-diagonal ones matrix grouping each branch's 8 columns.
    grp = jnp.arange(NUM_Q) // SUB_ACT_DIM
    g = (grp[:, None] == grp[None, :]).astype(jnp.float32)             # (24, 24)

    # Fold the value head into the advantage columns (value broadcasts over
    # every sub-action), keep the group-sum columns value-free (mean is over
    # adv only).
    w_adv = wa_flat + params["wv"] @ jnp.ones((1, NUM_Q), jnp.float32)  # (32, 24)
    b_adv = ba_flat + params["bv"]                                      # (1, 24)
    whead = jnp.concatenate([w_adv, wa_flat @ g], axis=1)               # (32, 48)
    bhead = jnp.concatenate([b_adv, ba_flat @ g], axis=1)               # (1, 48)

    # Bias rows: one row per layer, zero-padded to 128 lanes.
    bias_rows = jnp.zeros((8, LANES), jnp.float32)
    widths = list(HIDDEN_SIZES) + [HEAD_WIDTH]
    biases = [params["b0"], params["b1"], params["b2"], params["b3"], bhead]
    for r, (b, w) in enumerate(zip(biases, widths)):
        bias_rows = bias_rows.at[r, 0:w].set(b[0].astype(jnp.float32))

    slab = jnp.concatenate(
        [
            _pad_to(params["w0"], R_W1 - R_W0),   # (16, 128)
            _pad_to(params["w1"], R_W2 - R_W1),   # (128, 128)
            _pad_to(params["w2"], R_W3 - R_W2),   # (128, 128)
            _pad_to(params["w3"], R_WH - R_W3),   # (128, 128)
            _pad_to(whead, R_B - R_WH),           # (128, 128)
            bias_rows,                            # (8, 128)
        ],
        axis=0,
    )
    assert slab.shape == (SLAB_ROWS, LANES), slab.shape
    return slab


def branch_dueling_dqn_forward(x, params):
    """x: (B, obs_dim) float32 -> (B, act_dim, sub_act_dim) float32."""
    batch = x.shape[0]
    slab = _pack_params(params)
    # adv.mean() in torch is a scalar mean over ALL (batch * sub) elements.
    inv_scale = jnp.full((1, 1), 1.0 / (batch * SUB_ACT_DIM), jnp.float32)
    q_flat = pl.pallas_call(
        _branch_dqn_kernel,
        out_shape=jax.ShapeDtypeStruct((batch, NUM_Q), jnp.float32),
        in_specs=[
            pl.BlockSpec(memory_space=pltpu.MemorySpace.SMEM),   # inv_scale scalar
            pl.BlockSpec(memory_space=pltpu.MemorySpace.VMEM),   # x
            pl.BlockSpec(memory_space=pltpu.MemorySpace.VMEM),   # packed param slab
        ],
        out_specs=pl.BlockSpec(memory_space=pltpu.MemorySpace.VMEM),
    )(inv_scale, x, slab)
    # Free layout plumbing: present the branches axis outside the kernel.
    return q_flat.reshape(batch, ACT_DIM, SUB_ACT_DIM)


def init_params(key):
    """Deterministic synthetic parameters. Linear weights stored as (in, out)."""
    sizes = (OBS_DIM,) + HIDDEN_SIZES
    keys = jax.random.split(key, 16)
    p = {}
    for j in range(4):
        fan_in, fan_out = sizes[j], sizes[j + 1]
        p[f"w{j}"] = jax.random.normal(keys[2 * j], (fan_in, fan_out), jnp.float32) * 0.1
        p[f"b{j}"] = jax.random.normal(keys[2 * j + 1], (1, fan_out), jnp.float32) * 0.1
    hid = HIDDEN_SIZES[-1]
    p["wv"] = jax.random.normal(keys[8], (hid, 1), jnp.float32) * 0.1
    p["bv"] = jax.random.normal(keys[9], (1, 1), jnp.float32) * 0.1
    p["wa"] = jax.random.normal(keys[10], (ACT_DIM, hid, SUB_ACT_DIM), jnp.float32) * 0.1
    p["ba"] = jax.random.normal(keys[11], (ACT_DIM, 1, SUB_ACT_DIM), jnp.float32) * 0.1
    return p


def reference_forward(x, p):
    """Pure-JAX reference mirroring the PyTorch forward (unfused heads)."""
    h = x
    for j in range(4):
        h = jnp.maximum(h @ p[f"w{j}"] + p[f"b{j}"], 0.0)
    value = h @ p["wv"] + p["bv"]                           # (B, 1)
    qs = []
    for i in range(ACT_DIM):
        adv = h @ p["wa"][i] + p["ba"][i]                   # (B, sub)
        qs.append(value + adv - jnp.mean(adv))
    return jnp.stack(qs, axis=1)                            # (B, act_dim, sub)


if __name__ == "__main__":
    key = jax.random.PRNGKey(0)
    k_params, k_x = jax.random.split(key)
    params = init_params(k_params)
    x = jax.random.normal(k_x, (BATCH, OBS_DIM), jnp.float32)

    q = branch_dueling_dqn_forward(x, params)
    q = jax.block_until_ready(q)

    q_ref = reference_forward(x, params)
    assert q.shape == (BATCH, ACT_DIM, SUB_ACT_DIM), q.shape
    assert jnp.allclose(q, q_ref, atol=1e-4, rtol=1e-4), "mismatch vs reference"

    print("KERNEL_OK")
</pallas_src>

<mosaic_0001>
module attributes {stable_mosaic.version = 11 : i64} {
  func.func @_branch_dqn_kernel(%arg0: memref<1x1xf32, #tpu.memory_space<smem>>, %arg1: memref<2x16xf32, #tpu.memory_space<vmem>>, %arg2: memref<536x128xf32, #tpu.memory_space<vmem>>, %arg3: memref<2x24xf32, #tpu.memory_space<vmem>>) attributes {dimension_semantics = [], scalar_prefetch = 0 : i64, scratch_operands = 0 : i64, tpu.core_type = #tpu.core_type<tc>} {
    %c0 = arith.constant 0 : index
    %c0_0 = arith.constant 0 : index
    %0 = vector.load %arg1[%c0, %c0_0] : memref<2x16xf32, #tpu.memory_space<vmem>>, vector<2x16xf32>
    %c0_1 = arith.constant 0 : index
    %c0_2 = arith.constant 0 : index
    %1 = vector.load %arg2[%c0_1, %c0_2] : memref<536x128xf32, #tpu.memory_space<vmem>>, vector<16x128xf32>
    %cst = arith.constant dense<0.000000e+00> : vector<2x128xf32>
    %2 = tpu.matmul %0, %1, %cst {dimension_numbers = #tpu.dot_dimension_numbers<[1], [0], [0], [1], [0, 0, 1, 1], [], []>} : vector<2x16xf32>, vector<16x128xf32>, vector<2x128xf32> -> vector<2x128xf32>
    %c528 = arith.constant 528 : index
    %c0_3 = arith.constant 0 : index
    %3 = vector.load %arg2[%c528, %c0_3] : memref<536x128xf32, #tpu.memory_space<vmem>>, vector<1x128xf32>
    %4 = vector.broadcast %3 : vector<1x128xf32> to vector<2x128xf32>
    %5 = arith.addf %2, %4 : vector<2x128xf32>
    %cst_4 = arith.constant 0.000000e+00 : f32
    %6 = vector.broadcast %cst_4 : f32 to vector<2x128xf32>
    %7 = arith.maximumf %5, %6 : vector<2x128xf32>
    %c16 = arith.constant 16 : index
    %c0_5 = arith.constant 0 : index
    %8 = vector.load %arg2[%c16, %c0_5] : memref<536x128xf32, #tpu.memory_space<vmem>>, vector<128x128xf32>
    %cst_6 = arith.constant dense<0.000000e+00> : vector<2x128xf32>
    %9 = tpu.matmul %7, %8, %cst_6 {dimension_numbers = #tpu.dot_dimension_numbers<[1], [0], [0], [1], [0, 0, 1, 1], [], []>} : vector<2x128xf32>, vector<128x128xf32>, vector<2x128xf32> -> vector<2x128xf32>
    %c529 = arith.constant 529 : index
    %c0_7 = arith.constant 0 : index
    %10 = vector.load %arg2[%c529, %c0_7] : memref<536x128xf32, #tpu.memory_space<vmem>>, vector<1x128xf32>
    %11 = vector.broadcast %10 : vector<1x128xf32> to vector<2x128xf32>
    %12 = arith.addf %9, %11 : vector<2x128xf32>
    %cst_8 = arith.constant 0.000000e+00 : f32
    %13 = vector.broadcast %cst_8 : f32 to vector<2x128xf32>
    %14 = arith.maximumf %12, %13 : vector<2x128xf32>
    %c144 = arith.constant 144 : index
    %c0_9 = arith.constant 0 : index
    %15 = vector.load %arg2[%c144, %c0_9] : memref<536x128xf32, #tpu.memory_space<vmem>>, vector<128x128xf32>
    %cst_10 = arith.constant dense<0.000000e+00> : vector<2x128xf32>
    %16 = tpu.matmul %14, %15, %cst_10 {dimension_numbers = #tpu.dot_dimension_numbers<[1], [0], [0], [1], [0, 0, 1, 1], [], []>} : vector<2x128xf32>, vector<128x128xf32>, vector<2x128xf32> -> vector<2x128xf32>
    %c530 = arith.constant 530 : index
    %c0_11 = arith.constant 0 : index
    %17 = vector.load %arg2[%c530, %c0_11] : memref<536x128xf32, #tpu.memory_space<vmem>>, vector<1x128xf32>
    %18 = vector.broadcast %17 : vector<1x128xf32> to vector<2x128xf32>
    %19 = arith.addf %16, %18 : vector<2x128xf32>
    %cst_12 = arith.constant 0.000000e+00 : f32
    %20 = vector.broadcast %cst_12 : f32 to vector<2x128xf32>
    %21 = arith.maximumf %19, %20 : vector<2x128xf32>
    %c272 = arith.constant 272 : index
    %c0_13 = arith.constant 0 : index
    %22 = vector.load %arg2[%c272, %c0_13] : memref<536x128xf32, #tpu.memory_space<vmem>>, vector<128x128xf32>
    %cst_14 = arith.constant dense<0.000000e+00> : vector<2x128xf32>
    %23 = tpu.matmul %21, %22, %cst_14 {dimension_numbers = #tpu.dot_dimension_numbers<[1], [0], [0], [1], [0, 0, 1, 1], [], []>} : vector<2x128xf32>, vector<128x128xf32>, vector<2x128xf32> -> vector<2x128xf32>
    %c531 = arith.constant 531 : index
    %c0_15 = arith.constant 0 : index
    %24 = vector.load %arg2[%c531, %c0_15] : memref<536x128xf32, #tpu.memory_space<vmem>>, vector<1x128xf32>
    %25 = vector.broadcast %24 : vector<1x128xf32> to vector<2x128xf32>
    %26 = arith.addf %23, %25 : vector<2x128xf32>
    %cst_16 = arith.constant 0.000000e+00 : f32
    %27 = vector.broadcast %cst_16 : f32 to vector<2x128xf32>
    %28 = arith.maximumf %26, %27 : vector<2x128xf32>
    %c400 = arith.constant 400 : index
    %c0_17 = arith.constant 0 : index
    %29 = vector.load %arg2[%c400, %c0_17] : memref<536x128xf32, #tpu.memory_space<vmem>>, vector<128x128xf32>
    %cst_18 = arith.constant dense<0.000000e+00> : vector<2x128xf32>
    %30 = tpu.matmul %28, %29, %cst_18 {dimension_numbers = #tpu.dot_dimension_numbers<[1], [0], [0], [1], [0, 0, 1, 1], [], []>} : vector<2x128xf32>, vector<128x128xf32>, vector<2x128xf32> -> vector<2x128xf32>
    %c532 = arith.constant 532 : index
    %c0_19 = arith.constant 0 : index
    %31 = vector.load %arg2[%c532, %c0_19] : memref<536x128xf32, #tpu.memory_space<vmem>>, vector<1x128xf32>
    %32 = vector.broadcast %31 : vector<1x128xf32> to vector<2x128xf32>
    %33 = arith.addf %30, %32 : vector<2x128xf32>
    %34 = vector.extract_strided_slice %33 {offsets = [0, 0], sizes = [2, 24], strides = [1, 1]} : vector<2x128xf32> to vector<2x24xf32>
    %35 = vector.extract_strided_slice %33 {offsets = [0, 24], sizes = [2, 24], strides = [1, 1]} : vector<2x128xf32> to vector<2x24xf32>
    %cst_20 = arith.constant dense<0.000000e+00> : vector<24xf32>
    %36 = vector.multi_reduction <add>, %35, %cst_20 [0] : vector<2x24xf32> to vector<24xf32>
    %37 = vector.shape_cast %36 : vector<24xf32> to vector<1x24xf32>
    %c0_21 = arith.constant 0 : index
    %c0_22 = arith.constant 0 : index
    %38 = memref.load %arg0[%c0_21, %c0_22] : memref<1x1xf32, #tpu.memory_space<smem>>
    %39 = vector.broadcast %38 : f32 to vector<1x24xf32>
    %40 = arith.mulf %37, %39 : vector<1x24xf32>
    %41 = vector.broadcast %40 : vector<1x24xf32> to vector<2x24xf32>
    %42 = arith.subf %34, %41 : vector<2x24xf32>
    %c0_23 = arith.constant 0 : index
    %c0_24 = arith.constant 0 : index
    %43 = vector.load %arg3[%c0_23, %c0_24] : memref<2x24xf32, #tpu.memory_space<vmem>>, vector<2x24xf32>
    tpu.vector_store %arg3[%c0_23, %c0_24], %42 {strides = array<i32>} : memref<2x24xf32, #tpu.memory_space<vmem>>, vector<2x24xf32>,
    return
  }
}

</mosaic_0001>

<llo_original>
// kernel: tpu_custom_call.1
$region0: #{tpu_custom_call.1}
  #allocation0 [shape = 'u32[]', space=smem, size = 0x4, offset = 0x4, fixed_abs, tag = 'smem constant byte address 0x4 - core index']
  #allocation1 [shape = 'u32[144,128]{1,0:T(1,128)}', space=vmem, size = 0x12000, scoped, tag = 'internal scratch']
  #allocation2 [shape = 'f32[1,1]{1,0:T(1,128)S(6)}', space=smem, size = 0x200, scoped, tag = 'scoped memory for tpu_custom_call.1']
  %s0 = inlined_call_operand.<no memory space> [shape: f32[1,1], index: 0, kind: input, shape index: {}]
  %s1 = inlined_call_operand.vmem [shape: f32[2,16], index: 1, kind: input, shape index: {}]
  %s2 = inlined_call_operand.hbm [shape: f32[536,128], index: 2, kind: input, shape index: {}]
  %s3 = inlined_call_operand.hbm [shape: f32[2,24], index: 3, kind: output, shape index: {}]
  %s4 = sld [smem:[#allocation0]]
  $region26: #{tpu_custom_call.1} parent=0
    _
  %s6 = ssub.s32 1, %s4
  %s7 = scalar_select 0, %s6, %s4
  %8 = sst [smem:[#allocation2]] %s0
  $region1: #{tpu_custom_call.1} parent=0
    #allocation3 [shape = 'u8[274432]{0}', space=vmem, size = 0x43000, scoped, tag = 'input window, operand 2, single buffered']
    #allocation4 [shape = 's32[1]{0}', space=sflag, size = 0x4, scoped, tag = 'scoped memory for tpu_custom_call.1']
    #allocation5 [shape = 's32[1]{0}', space=sflag, size = 0x4, scoped, tag = 'scoped memory for tpu_custom_call.1']
    #allocation6 [shape = 'u8[1024]{0}', space=vmem, size = 0x400, scoped, tag = 'output window, operand 0, single buffered']
    %9 = vsyncpa [#allocation4], 0
    %10 = vsyncpa [#allocation5], 0
    // Predicated region
    $region2: #{tpu_custom_call.1} parent=1 // pred_check
      _
    $region3: #{tpu_custom_call.1} parent=1 // pred_check_branch
      %12 = sbr.rel (0) target = $region5
    $region4: #{tpu_custom_call.1} parent=1 // pred_region
      _
    $region5: #{tpu_custom_call.1} parent=1 // pred_fallthru
      _
    // Predicated region
    $region6: #{tpu_custom_call.1} parent=1 // pred_check
      _
    $region7: #{tpu_custom_call.1} parent=1 // pred_check_branch
      %14 = sbr.rel (0) target = $region9
    $region8: #{tpu_custom_call.1} parent=1 // pred_region
      _
    $region9: #{tpu_custom_call.1} parent=1 // pred_fallthru
      _
    // Predicated region
    $region10: #{tpu_custom_call.1} parent=1 // pred_check
      _
    $region11: #{tpu_custom_call.1} parent=1 // pred_check_branch
      %16 = sbr.rel (0) target = $region13
    $region12: #{tpu_custom_call.1} parent=1 // pred_region
      %s18 = ssub.s32 8576, 8576
      %19 = vsyncadd [#allocation4], %s18
      %s20 = sshll.u32 [#allocation3], 4
      %s21 = int_to_ptr.vmem [resolvable:$true] %s20
      %26 = dma.hbm_to_vmem [thread:$0]  %s2, 8576, %s21, [#allocation4], 128, 128, 8
    $region13: #{tpu_custom_call.1} parent=1 // pred_fallthru
      _
    // Predicated region
    $region14: #{tpu_custom_call.1} parent=1 // pred_check
      _
    $region15: #{tpu_custom_call.1} parent=1 // pred_check_branch
      %28 = sbr.rel (0) target = $region17
    $region16: #{tpu_custom_call.1} parent=1 // pred_region
      %29 = dma.done [#allocation4], 8576
    $region17: #{tpu_custom_call.1} parent=1 // pred_fallthru
      _
    %v30 = vld [vmem:[%s1] sm:$0x3]
    %v31 = vld [vmem:[#allocation3] sm:$0xff]
    %v32 = vld [vmem:[#allocation3 + $0x8] sm:$0xff]
    %v33 = vld [vmem:[#allocation3 + $0x210] sm:$0x1]
    %v34 = vlaneseq
    %v35 = vshrl.u32 %v34, 7
    %v36 = vsub.s32 0, %v35
    %v37 = vrot.slane %v33, %v36
    %vm38 = vcmask 130048
    %v40 = vsel %vm38, %v30, 0
    %42 = vmatprep.subr.mxu0 0.0
    %43 = vmatpush1.msra.mxu0 %v31
    %44 = vmatprep.subr.mxu0 0.0
    %45 = vmatpush1.msra.mxu0 %v32
    %46 = vmatprep.subr.mxu0 0.0
    %47 = vmatpush1.msra.mxu0 0.0
    %48 = vmatprep.subr.mxu0 0.0
    %49 = vmatpush1.msra.mxu0 0.0
    %50 = vmatprep.subr.mxu0 0.0
    %51 = vmatpush1.msra.mxu0 0.0
    %52 = vmatprep.subr.mxu0 0.0
    %53 = vmatpush1.msra.mxu0 0.0
    %54 = vmatprep.subr.mxu0 0.0
    %55 = vmatpush1.msra.mxu0 0.0
    %56 = vmatprep.subr.mxu0 0.0
    %57 = vmatpush1.msra.mxu0 0.0
    %58 = vmatprep.subr.mxu0 0.0
    %59 = vmatpush1.msra.mxu0 0.0
    %60 = vmatprep.subr.mxu0 0.0
    %61 = vmatpush1.msra.mxu0 0.0
    %62 = vmatprep.subr.mxu0 0.0
    %63 = vmatpush1.msra.mxu0 0.0
    %64 = vmatprep.subr.mxu0 0.0
    %65 = vmatpush1.msra.mxu0 0.0
    %66 = vmatprep.subr.mxu0 0.0
    %67 = vmatpush1.msra.mxu0 0.0
    %68 = vmatprep.subr.mxu0 0.0
    %69 = vmatpush1.msra.mxu0 0.0
    %70 = vmatprep.subr.mxu0 0.0
    %71 = vmatpush1.msra.mxu0 0.0
    %72 = vmatprep.subr.mxu0 0.0
    %73 = vmatpush1.msra.mxu0 0.0
    %74 = vmatprep.subr.mxu0 0.0
    %75 = vmatpush1.msra.mxu0 0.0
    %76 = vmatprep.subr.mxu0 0.0
    %77 = vmatpush1.msra.mxu0 0.0
    %78 = vmatprep.subr.mxu0 0.0
    %79 = vmatpush1.msra.mxu0 0.0
    %80 = vmatprep.subr.mxu0 0.0
    %81 = vmatpush1.msra.mxu0 0.0
    %82 = vmatprep.subr.mxu0 0.0
    %83 = vmatpush1.msra.mxu0 0.0
    %84 = vmatprep.subr.mxu0 0.0
    %85 = vmatpush1.msra.mxu0 0.0
    %86 = vmatprep.subr.mxu0 0.0
    %87 = vmatpush1.msra.mxu0 0.0
    %88 = vmatprep.subr.mxu0 0.0
    %89 = vmatpush1.msra.mxu0 0.0
    %90 = vmatprep.subr.mxu0 0.0
    %91 = vmatpush1.msra.mxu0 0.0
    %92 = vmatprep.subr.mxu0 0.0
    %93 = vmatpush1.msra.mxu0 0.0
    %94 = vmatprep.subr.mxu0 0.0
    %95 = vmatpush1.msra.mxu0 0.0
    %96 = vmatprep.subr.mxu0 0.0
    %97 = vmatpush1.msra.mxu0 0.0
    %98 = vmatprep.subr.mxu0 0.0
    %99 = vmatpush1.msra.mxu0 0.0
    %100 = vmatprep.subr.mxu0 0.0
    %101 = vmatpush1.msra.mxu0 0.0
    %102 = vmatprep.subr.mxu0 0.0
    %103 = vmatpush1.msra.mxu0 0.0
    %104 = vmatprep.subr.mxu0 0.0
    %105 = vmatpush1.msra.mxu0 0.0
    %106 = vmatprep.mubr.f32.mxu0 0.0
    %107 = vmatmul.mubr.f32.gmra.mrb[0].mxu0 %v40
    %v108 = vpop.f32.mrb[0].mxu0
    %v109 = vadd.f32 %v37, %v108
    %v110 = vpop.f32.mrb[0].mxu0
    %111 = vdwg.mxu0
    %v112 = vmax.f32 %v109, 0.0
    %v113 = vld [vmem:[#allocation3 + $0x10] sm:$0xff]
    %v114 = vld [vmem:[#allocation3 + $0x18] sm:$0xff]
    %v115 = vld [vmem:[#allocation3 + $0x20] sm:$0xff]
    %v116 = vld [vmem:[#allocation3 + $0x28] sm:$0xff]
    %v117 = vld [vmem:[#allocation3 + $0x30] sm:$0xff]
    %v118 = vld [vmem:[#allocation3 + $0x38] sm:$0xff]
    %v119 = vld [vmem:[#allocation3 + $0x40] sm:$0xff]
    %v120 = vld [vmem:[#allocation3 + $0x48] sm:$0xff]
    %v121 = vld [vmem:[#allocation3 + $0x50] sm:$0xff]
    %v122 = vld [vmem:[#allocation3 + $0x58] sm:$0xff]
    %v123 = vld [vmem:[#allocation3 + $0x60] sm:$0xff]
    %v124 = vld [vmem:[#allocation3 + $0x68] sm:$0xff]
    %v125 = vld [vmem:[#allocation3 + $0x70] sm:$0xff]
    %v126 = vld [vmem:[#allocation3 + $0x78] sm:$0xff]
    %v127 = vld [vmem:[#allocation3 + $0x80] sm:$0xff]
    %v128 = vld [vmem:[#allocation3 + $0x88] sm:$0xff]
    %v129 = vld [vmem:[#allocation3 + $0x211] sm:$0x1]
    %v130 = vlaneseq
    %v131 = vshrl.u32 %v130, 7
    %v132 = vsub.s32 0, %v131
    %v133 = vrot.slane %v129, %v132
    %134 = vmatprep.subr.mxu0 0.0
    %135 = vmatpush1.msra.mxu0 %v113
    %136 = vmatprep.subr.mxu0 0.0
    %137 = vmatpush1.msra.mxu0 %v114
    %138 = vmatprep.subr.mxu0 0.0
    %139 = vmatpush1.msra.mxu0 %v115
    %140 = vmatprep.subr.mxu0 0.0
    %141 = vmatpush1.msra.mxu0 %v116
    %142 = vmatprep.subr.mxu0 0.0
    %143 = vmatpush1.msra.mxu0 %v117
    %144 = vmatprep.subr.mxu0 0.0
    %145 = vmatpush1.msra.mxu0 %v118
    %146 = vmatprep.subr.mxu0 0.0
    %147 = vmatpush1.msra.mxu0 %v119
    %148 = vmatprep.subr.mxu0 0.0
    %149 = vmatpush1.msra.mxu0 %v120
    %150 = vmatprep.subr.mxu0 0.0
    %151 = vmatpush1.msra.mxu0 %v121
    %152 = vmatprep.subr.mxu0 0.0
    %153 = vmatpush1.msra.mxu0 %v122
    %154 = vmatprep.subr.mxu0 0.0
    %155 = vmatpush1.msra.mxu0 %v123
    %156 = vmatprep.subr.mxu0 0.0
    %157 = vmatpush1.msra.mxu0 %v124
    %158 = vmatprep.subr.mxu0 0.0
    %159 = vmatpush1.msra.mxu0 %v125
    %160 = vmatprep.subr.mxu0 0.0
    %161 = vmatpush1.msra.mxu0 %v126
    %162 = vmatprep.subr.mxu0 0.0
    %163 = vmatpush1.msra.mxu0 %v127
    %164 = vmatprep.subr.mxu0 0.0
    %165 = vmatpush1.msra.mxu0 %v128
    %166 = vmatprep.subr.mxu0 0.0
    %167 = vmatpush1.msra.mxu0 0.0
    %168 = vmatprep.subr.mxu0 0.0
    %169 = vmatpush1.msra.mxu0 0.0
    %170 = vmatprep.subr.mxu0 0.0
    %171 = vmatpush1.msra.mxu0 0.0
    %172 = vmatprep.subr.mxu0 0.0
    %173 = vmatpush1.msra.mxu0 0.0
    %174 = vmatprep.subr.mxu0 0.0
    %175 = vmatpush1.msra.mxu0 0.0
    %176 = vmatprep.subr.mxu0 0.0
    %177 = vmatpush1.msra.mxu0 0.0
    %178 = vmatprep.subr.mxu0 0.0
    %179 = vmatpush1.msra.mxu0 0.0
    %180 = vmatprep.subr.mxu0 0.0
    %181 = vmatpush1.msra.mxu0 0.0
    %182 = vmatprep.subr.mxu0 0.0
    %183 = vmatpush1.msra.mxu0 0.0
    %184 = vmatprep.subr.mxu0 0.0
    %185 = vmatpush1.msra.mxu0 0.0
    %186 = vmatprep.subr.mxu0 0.0
    %187 = vmatpush1.msra.mxu0 0.0
    %188 = vmatprep.subr.mxu0 0.0
    %189 = vmatpush1.msra.mxu0 0.0
    %190 = vmatprep.subr.mxu0 0.0
    %191 = vmatpush1.msra.mxu0 0.0
    %192 = vmatprep.subr.mxu0 0.0
    %193 = vmatpush1.msra.mxu0 0.0
    %194 = vmatprep.subr.mxu0 0.0
    %195 = vmatpush1.msra.mxu0 0.0
    %196 = vmatprep.subr.mxu0 0.0
    %197 = vmatpush1.msra.mxu0 0.0
    %198 = vmatprep.mubr.f32.mxu0 0.0
    %199 = vmatmul.mubr.f32.gmra.mrb[0].mxu0 %v112
    %v200 = vpop.f32.mrb[0].mxu0
    %v201 = vadd.f32 %v133, %v200
    %v202 = vpop.f32.mrb[0].mxu0
    %203 = vdwg.mxu0
    %v204 = vmax.f32 %v201, 0.0
    %v205 = vld [vmem:[#allocation3 + $0x90] sm:$0xff]
    %v206 = vld [vmem:[#allocation3 + $0x98] sm:$0xff]
    %v207 = vld [vmem:[#allocation3 + $0xa0] sm:$0xff]
    %v208 = vld [vmem:[#allocation3 + $0xa8] sm:$0xff]
    %v209 = vld [vmem:[#allocation3 + $0xb0] sm:$0xff]
    %v210 = vld [vmem:[#allocation3 + $0xb8] sm:$0xff]
    %v211 = vld [vmem:[#allocation3 + $0xc0] sm:$0xff]
    %v212 = vld [vmem:[#allocation3 + $0xc8] sm:$0xff]
    %v213 = vld [vmem:[#allocation3 + $0xd0] sm:$0xff]
    %v214 = vld [vmem:[#allocation3 + $0xd8] sm:$0xff]
    %v215 = vld [vmem:[#allocation3 + $0xe0] sm:$0xff]
    %v216 = vld [vmem:[#allocation3 + $0xe8] sm:$0xff]
    %v217 = vld [vmem:[#allocation3 + $0xf0] sm:$0xff]
    %v218 = vld [vmem:[#allocation3 + $0xf8] sm:$0xff]
    %v219 = vld [vmem:[#allocation3 + $0x100] sm:$0xff]
    %v220 = vld [vmem:[#allocation3 + $0x108] sm:$0xff]
    %v221 = vld [vmem:[#allocation3 + $0x212] sm:$0x1]
    %v222 = vlaneseq
    %v223 = vshrl.u32 %v222, 7
    %v224 = vsub.s32 0, %v223
    %v225 = vrot.slane %v221, %v224
    %226 = vmatprep.subr.mxu0 0.0
    %227 = vmatpush1.msra.mxu0 %v205
    %228 = vmatprep.subr.mxu0 0.0
    %229 = vmatpush1.msra.mxu0 %v206
    %230 = vmatprep.subr.mxu0 0.0
    %231 = vmatpush1.msra.mxu0 %v207
    %232 = vmatprep.subr.mxu0 0.0
    %233 = vmatpush1.msra.mxu0 %v208
    %234 = vmatprep.subr.mxu0 0.0
    %235 = vmatpush1.msra.mxu0 %v209
    %236 = vmatprep.subr.mxu0 0.0
    %237 = vmatpush1.msra.mxu0 %v210
    %238 = vmatprep.subr.mxu0 0.0
    %239 = vmatpush1.msra.mxu0 %v211
    %240 = vmatprep.subr.mxu0 0.0
    %241 = vmatpush1.msra.mxu0 %v212
    %242 = vmatprep.subr.mxu0 0.0
    %243 = vmatpush1.msra.mxu0 %v213
    %244 = vmatprep.subr.mxu0 0.0
    %245 = vmatpush1.msra.mxu0 %v214
    %246 = vmatprep.subr.mxu0 0.0
    %247 = vmatpush1.msra.mxu0 %v215
    %248 = vmatprep.subr.mxu0 0.0
    %249 = vmatpush1.msra.mxu0 %v216
    %250 = vmatprep.subr.mxu0 0.0
    %251 = vmatpush1.msra.mxu0 %v217
    %252 = vmatprep.subr.mxu0 0.0
    %253 = vmatpush1.msra.mxu0 %v218
    %254 = vmatprep.subr.mxu0 0.0
    %255 = vmatpush1.msra.mxu0 %v219
    %256 = vmatprep.subr.mxu0 0.0
    %257 = vmatpush1.msra.mxu0 %v220
    %258 = vmatprep.subr.mxu0 0.0
    %259 = vmatpush1.msra.mxu0 0.0
    %260 = vmatprep.subr.mxu0 0.0
    %261 = vmatpush1.msra.mxu0 0.0
    %262 = vmatprep.subr.mxu0 0.0
    %263 = vmatpush1.msra.mxu0 0.0
    %264 = vmatprep.subr.mxu0 0.0
    %265 = vmatpush1.msra.mxu0 0.0
    %266 = vmatprep.subr.mxu0 0.0
    %267 = vmatpush1.msra.mxu0 0.0
    %268 = vmatprep.subr.mxu0 0.0
    %269 = vmatpush1.msra.mxu0 0.0
    %270 = vmatprep.subr.mxu0 0.0
    %271 = vmatpush1.msra.mxu0 0.0
    %272 = vmatprep.subr.mxu0 0.0
    %273 = vmatpush1.msra.mxu0 0.0
    %274 = vmatprep.subr.mxu0 0.0
    %275 = vmatpush1.msra.mxu0 0.0
    %276 = vmatprep.subr.mxu0 0.0
    %277 = vmatpush1.msra.mxu0 0.0
    %278 = vmatprep.subr.mxu0 0.0
    %279 = vmatpush1.msra.mxu0 0.0
    %280 = vmatprep.subr.mxu0 0.0
    %281 = vmatpush1.msra.mxu0 0.0
    %282 = vmatprep.subr.mxu0 0.0
    %283 = vmatpush1.msra.mxu0 0.0
    %284 = vmatprep.subr.mxu0 0.0
    %285 = vmatpush1.msra.mxu0 0.0
    %286 = vmatprep.subr.mxu0 0.0
    %287 = vmatpush1.msra.mxu0 0.0
    %288 = vmatprep.subr.mxu0 0.0
    %289 = vmatpush1.msra.mxu0 0.0
    %290 = vmatprep.mubr.f32.mxu0 0.0
    %291 = vmatmul.mubr.f32.gmra.mrb[0].mxu0 %v204
    %v292 = vpop.f32.mrb[0].mxu0
    %v293 = vadd.f32 %v225, %v292
    %v294 = vpop.f32.mrb[0].mxu0
    %295 = vdwg.mxu0
    %v296 = vmax.f32 %v293, 0.0
    %v297 = vld [vmem:[#allocation3 + $0x110] sm:$0xff]
    %v298 = vld [vmem:[#allocation3 + $0x118] sm:$0xff]
    %v299 = vld [vmem:[#allocation3 + $0x120] sm:$0xff]
    %v300 = vld [vmem:[#allocation3 + $0x128] sm:$0xff]
    %v301 = vld [vmem:[#allocation3 + $0x130] sm:$0xff]
    %v302 = vld [vmem:[#allocation3 + $0x138] sm:$0xff]
    %v303 = vld [vmem:[#allocation3 + $0x140] sm:$0xff]
    %v304 = vld [vmem:[#allocation3 + $0x148] sm:$0xff]
    %v305 = vld [vmem:[#allocation3 + $0x150] sm:$0xff]
    %v306 = vld [vmem:[#allocation3 + $0x158] sm:$0xff]
    %v307 = vld [vmem:[#allocation3 + $0x160] sm:$0xff]
    %v308 = vld [vmem:[#allocation3 + $0x168] sm:$0xff]
    %v309 = vld [vmem:[#allocation3 + $0x170] sm:$0xff]
    %v310 = vld [vmem:[#allocation3 + $0x178] sm:$0xff]
    %v311 = vld [vmem:[#allocation3 + $0x180] sm:$0xff]
    %v312 = vld [vmem:[#allocation3 + $0x188] sm:$0xff]
    %v313 = vld [vmem:[#allocation3 + $0x213] sm:$0x1]
    %v314 = vlaneseq
    %v315 = vshrl.u32 %v314, 7
    %v316 = vsub.s32 0, %v315
    %v317 = vrot.slane %v313, %v316
    %318 = vmatprep.subr.mxu0 0.0
    %319 = vmatpush1.msra.mxu0 %v297
    %320 = vmatprep.subr.mxu0 0.0
    %321 = vmatpush1.msra.mxu0 %v298
    %322 = vmatprep.subr.mxu0 0.0
    %323 = vmatpush1.msra.mxu0 %v299
    %324 = vmatprep.subr.mxu0 0.0
    %325 = vmatpush1.msra.mxu0 %v300
    %326 = vmatprep.subr.mxu0 0.0
    %327 = vmatpush1.msra.mxu0 %v301
    %328 = vmatprep.subr.mxu0 0.0
    %329 = vmatpush1.msra.mxu0 %v302
    %330 = vmatprep.subr.mxu0 0.0
    %331 = vmatpush1.msra.mxu0 %v303
    %332 = vmatprep.subr.mxu0 0.0
    %333 = vmatpush1.msra.mxu0 %v304
    %334 = vmatprep.subr.mxu0 0.0
    %335 = vmatpush1.msra.mxu0 %v305
    %336 = vmatprep.subr.mxu0 0.0
    %337 = vmatpush1.msra.mxu0 %v306
    %338 = vmatprep.subr.mxu0 0.0
    %339 = vmatpush1.msra.mxu0 %v307
    %340 = vmatprep.subr.mxu0 0.0
    %341 = vmatpush1.msra.mxu0 %v308
    %342 = vmatprep.subr.mxu0 0.0
    %343 = vmatpush1.msra.mxu0 %v309
    %344 = vmatprep.subr.mxu0 0.0
    %345 = vmatpush1.msra.mxu0 %v310
    %346 = vmatprep.subr.mxu0 0.0
    %347 = vmatpush1.msra.mxu0 %v311
    %348 = vmatprep.subr.mxu0 0.0
    %349 = vmatpush1.msra.mxu0 %v312
    %350 = vmatprep.subr.mxu0 0.0
    %351 = vmatpush1.msra.mxu0 0.0
    %352 = vmatprep.subr.mxu0 0.0
    %353 = vmatpush1.msra.mxu0 0.0
    %354 = vmatprep.subr.mxu0 0.0
    %355 = vmatpush1.msra.mxu0 0.0
    %356 = vmatprep.subr.mxu0 0.0
    %357 = vmatpush1.msra.mxu0 0.0
    %358 = vmatprep.subr.mxu0 0.0
    %359 = vmatpush1.msra.mxu0 0.0
    %360 = vmatprep.subr.mxu0 0.0
    %361 = vmatpush1.msra.mxu0 0.0
    %362 = vmatprep.subr.mxu0 0.0
    %363 = vmatpush1.msra.mxu0 0.0
    %364 = vmatprep.subr.mxu0 0.0
    %365 = vmatpush1.msra.mxu0 0.0
    %366 = vmatprep.subr.mxu0 0.0
    %367 = vmatpush1.msra.mxu0 0.0
    %368 = vmatprep.subr.mxu0 0.0
    %369 = vmatpush1.msra.mxu0 0.0
    %370 = vmatprep.subr.mxu0 0.0
    %371 = vmatpush1.msra.mxu0 0.0
    %372 = vmatprep.subr.mxu0 0.0
    %373 = vmatpush1.msra.mxu0 0.0
    %374 = vmatprep.subr.mxu0 0.0
    %375 = vmatpush1.msra.mxu0 0.0
    %376 = vmatprep.subr.mxu0 0.0
    %377 = vmatpush1.msra.mxu0 0.0
    %378 = vmatprep.subr.mxu0 0.0
    %379 = vmatpush1.msra.mxu0 0.0
    %380 = vmatprep.subr.mxu0 0.0
    %381 = vmatpush1.msra.mxu0 0.0
    %382 = vmatprep.mubr.f32.mxu0 0.0
    %383 = vmatmul.mubr.f32.gmra.mrb[0].mxu0 %v296
    %v384 = vpop.f32.mrb[0].mxu0
    %v385 = vadd.f32 %v317, %v384
    %v386 = vpop.f32.mrb[0].mxu0
    %387 = vdwg.mxu0
    %v388 = vmax.f32 %v385, 0.0
    %v389 = vld [vmem:[#allocation3 + $0x190] sm:$0xff]
    %v390 = vld [vmem:[#allocation3 + $0x198] sm:$0xff]
    %v391 = vld [vmem:[#allocation3 + $0x1a0] sm:$0xff]
    %v392 = vld [vmem:[#allocation3 + $0x1a8] sm:$0xff]
    %v393 = vld [vmem:[#allocation3 + $0x1b0] sm:$0xff]
    %v394 = vld [vmem:[#allocation3 + $0x1b8] sm:$0xff]
    %v395 = vld [vmem:[#allocation3 + $0x1c0] sm:$0xff]
    %v396 = vld [vmem:[#allocation3 + $0x1c8] sm:$0xff]
    %v397 = vld [vmem:[#allocation3 + $0x1d0] sm:$0xff]
    %v398 = vld [vmem:[#allocation3 + $0x1d8] sm:$0xff]
    %v399 = vld [vmem:[#allocation3 + $0x1e0] sm:$0xff]
    %v400 = vld [vmem:[#allocation3 + $0x1e8] sm:$0xff]
    %v401 = vld [vmem:[#allocation3 + $0x1f0] sm:$0xff]
    %v402 = vld [vmem:[#allocation3 + $0x1f8] sm:$0xff]
    %v403 = vld [vmem:[#allocation3 + $0x200] sm:$0xff]
    %v404 = vld [vmem:[#allocation3 + $0x208] sm:$0xff]
    %v405 = vld [vmem:[#allocation3 + $0x214] sm:$0x1]
    %v406 = vlaneseq
    %v407 = vshrl.u32 %v406, 7
    %v408 = vsub.s32 0, %v407
    %v409 = vrot.slane %v405, %v408
    %410 = vmatprep.subr.mxu0 0.0
    %411 = vmatpush1.msra.mxu0 %v389
    %412 = vmatprep.subr.mxu0 0.0
    %413 = vmatpush1.msra.mxu0 %v390
    %414 = vmatprep.subr.mxu0 0.0
    %415 = vmatpush1.msra.mxu0 %v391
    %416 = vmatprep.subr.mxu0 0.0
    %417 = vmatpush1.msra.mxu0 %v392
    %418 = vmatprep.subr.mxu0 0.0
    %419 = vmatpush1.msra.mxu0 %v393
    %420 = vmatprep.subr.mxu0 0.0
    %421 = vmatpush1.msra.mxu0 %v394
    %422 = vmatprep.subr.mxu0 0.0
    %423 = vmatpush1.msra.mxu0 %v395
    %424 = vmatprep.subr.mxu0 0.0
    %425 = vmatpush1.msra.mxu0 %v396
    %426 = vmatprep.subr.mxu0 0.0
    %427 = vmatpush1.msra.mxu0 %v397
    %428 = vmatprep.subr.mxu0 0.0
    %429 = vmatpush1.msra.mxu0 %v398
    %430 = vmatprep.subr.mxu0 0.0
    %431 = vmatpush1.msra.mxu0 %v399
    %432 = vmatprep.subr.mxu0 0.0
    %433 = vmatpush1.msra.mxu0 %v400
    %434 = vmatprep.subr.mxu0 0.0
    %435 = vmatpush1.msra.mxu0 %v401
    %436 = vmatprep.subr.mxu0 0.0
    %437 = vmatpush1.msra.mxu0 %v402
    %438 = vmatprep.subr.mxu0 0.0
    %439 = vmatpush1.msra.mxu0 %v403
    %440 = vmatprep.subr.mxu0 0.0
    %441 = vmatpush1.msra.mxu0 %v404
    %442 = vmatprep.subr.mxu0 0.0
    %443 = vmatpush1.msra.mxu0 0.0
    %444 = vmatprep.subr.mxu0 0.0
    %445 = vmatpush1.msra.mxu0 0.0
    %446 = vmatprep.subr.mxu0 0.0
    %447 = vmatpush1.msra.mxu0 0.0
    %448 = vmatprep.subr.mxu0 0.0
    %449 = vmatpush1.msra.mxu0 0.0
    %450 = vmatprep.subr.mxu0 0.0
    %451 = vmatpush1.msra.mxu0 0.0
    %452 = vmatprep.subr.mxu0 0.0
    %453 = vmatpush1.msra.mxu0 0.0
    %454 = vmatprep.subr.mxu0 0.0
    %455 = vmatpush1.msra.mxu0 0.0
    %456 = vmatprep.subr.mxu0 0.0
    %457 = vmatpush1.msra.mxu0 0.0
    %458 = vmatprep.subr.mxu0 0.0
    %459 = vmatpush1.msra.mxu0 0.0
    %460 = vmatprep.subr.mxu0 0.0
    %461 = vmatpush1.msra.mxu0 0.0
    %462 = vmatprep.subr.mxu0 0.0
    %463 = vmatpush1.msra.mxu0 0.0
    %464 = vmatprep.subr.mxu0 0.0
    %465 = vmatpush1.msra.mxu0 0.0
    %466 = vmatprep.subr.mxu0 0.0
    %467 = vmatpush1.msra.mxu0 0.0
    %468 = vmatprep.subr.mxu0 0.0
    %469 = vmatpush1.msra.mxu0 0.0
    %470 = vmatprep.subr.mxu0 0.0
    %471 = vmatpush1.msra.mxu0 0.0
    %472 = vmatprep.subr.mxu0 0.0
    %473 = vmatpush1.msra.mxu0 0.0
    %474 = vmatprep.mubr.f32.mxu0 0.0
    %475 = vmatmul.mubr.f32.gmra.mrb[0].mxu0 %v388
    %v476 = vpop.f32.mrb[0].mxu0
    %v477 = vadd.f32 %v409, %v476
    %v478 = vpop.f32.mrb[0].mxu0
    %479 = vdwg.mxu0
    %vm480 = vcmask 386240
    %v481 = vsel %vm480, %v477, 0.0
    %v482 = vrot.slane %v481, 4
    %v483 = vadd.f32 %v481, %v482
    %v484 = vrot.slane %v483, 2
    %v485 = vadd.f32 %v483, %v484
    %v486 = vrot.slane %v485, 1
    %v487 = vadd.f32 %v485, %v486
    %s488 = sld [smem:[#allocation2]]
    %v489 = vstv %s488
    %v490 = vmul.f32 %v487, %v489
    %492 = vrot.lane.b32.xlu0 %v490, 104
    %v493 = vpop.permute.xlu0 %492
    %v495 = vsub.f32 %v477, %v493
    %vm496 = vcmask 189440
    %497 = vst.msk [vmem:[#allocation6] sm:$0x3] %vm496, %v495
    // Predicated region
    $region18: #{tpu_custom_call.1} parent=1 // pred_check
      _
    $region19: #{tpu_custom_call.1} parent=1 // pred_check_branch
      %499 = sbr.rel (0) target = $region21
    $region20: #{tpu_custom_call.1} parent=1 // pred_region
      %s501 = ssub.s32 32, 32
      %502 = vsyncadd [#allocation5], %s501
      %s504 = sshll.u32 [#allocation6], 4
      %s505 = int_to_ptr.vmem [resolvable:$true] %s504
      %507 = dma.vmem_to_hbm [thread:$0]  %s505, 32, %s3, [#allocation5]
    $region21: #{tpu_custom_call.1} parent=1 // pred_fallthru
      _
    // Predicated region
    $region22: #{tpu_custom_call.1} parent=1 // pred_check
      _
    $region23: #{tpu_custom_call.1} parent=1 // pred_check_branch
      %509 = sbr.rel (0) target = $region25
    $region24: #{tpu_custom_call.1} parent=1 // pred_region
      %510 = dma.done [#allocation5], 32
    $region25: #{tpu_custom_call.1} parent=1 // pred_fallthru
      _
    %511 = vsyncpa [#allocation4], 1
    %512 = vsyncpa [#allocation5], 1

</llo_original>
